<compile_context>
chip_gen: v7x
topology: tpu7x:2x2x1
jax: 0.10.0
libtpu: 0.0.40
codegen_flags: <defaults>
</compile_context>

<pallas_src>
import functools

import jax
import jax.numpy as jnp
from jax.experimental import pallas as pl
from jax.experimental.pallas import tpu as pltpu


def _round_up(x, m):
    return (x + m - 1) // m * m


def _segment_offsets(dims):
    """8-aligned (f32 sublane tile) row offsets of each weight segment."""
    I, S, H, C, E, H1, H2 = dims
    ISH = I + S + H
    sizes = (ISH, C, E, H1)          # ctx_w, q1_w[:C], q1_w[C:], q2_w
    offs = []
    row = 0
    for s in sizes:
        start = _round_up(row, 8)
        offs.append(start)
        row = start + s
    return tuple(offs), _round_up(row, 8)


# ----------------------------------------------------------------------------
# Pallas kernel: context net + split q1 + 3-layer Q-net, lane-dense output
# ----------------------------------------------------------------------------
def _fullnet_kernel(x_ref, act_ref, w_ref, v_ref, out_ref, *,
                    ISH, C, E, H1, H2, B, A,
                    off_ctx, off_q1c, off_q1a, off_q2):
    """All-in-VMEM single-invocation kernel (shapes are tiny).

    x_ref   : (B, ISH)           pre-concatenated [instruction|state|hidden]
    act_ref : (B*A, E)           actions flattened to 2-D (row = b*A + a)
    w_ref   : (Wrows, Nmax)      packed [ctx_w; q1_w[:C]; q1_w[C:]; q2_w],
                                 each segment at an 8-aligned row offset
    v_ref   : (8, 128)           row 0: ctx_b, 1: q1_b, 2: q2_b,
                                 3: q3_w.T, 4: q3_b  (each starting at lane 0)
    out_ref : (1, B*A)           lane-dense Q row (reshaped to (B, A, 1) outside)
    """
    x = x_ref[...]                                        # (B, ISH)
    acts = act_ref[...]                                   # (B*A, E)

    # Static, sublane-aligned slices of the packed weight slab.
    w_ctx = w_ref[off_ctx:off_ctx + ISH, 0:C]             # (ISH, C)
    w1c = w_ref[off_q1c:off_q1c + C, 0:H1]                # (C,   H1)
    w1a = w_ref[off_q1a:off_q1a + E, 0:H1]                # (E,   H1)
    w2 = w_ref[off_q2:off_q2 + H1, 0:H2]                  # (H1,  H2)

    # Row-indexed, lane-0-aligned slices of the (8, 128) vector slab.
    b_ctx = v_ref[0:1, 0:C]                               # (1, C)
    b1 = v_ref[1:2, 0:H1]                                 # (1, H1)
    b2 = v_ref[2:3, 0:H2]                                 # (1, H2)
    w3 = v_ref[3:4, 0:H2]                                 # (1, H2)  == q3_w.T
    b3 = v_ref[4:5, 0:1]                                  # (1, 1)

    # --- context net: one MXU pass over the pre-concatenated input ----------
    ctx = jnp.maximum(
        jnp.dot(x, w_ctx, preferred_element_type=jnp.float32) + b_ctx, 0.0
    )                                                     # (B, C)

    # --- Q-net layer 1, split: per-batch context part + per-row action part --
    # No materialized (B*A, C) context replication, no lane-offset concat.
    pre1 = jnp.dot(ctx, w1c, preferred_element_type=jnp.float32) + b1    # (B, H1)
    act1 = jnp.dot(acts, w1a, preferred_element_type=jnp.float32)        # (B*A, H1)
    h1 = jnp.maximum(
        (act1.reshape(B, A, H1) + pre1[:, None, :]).reshape(B * A, H1),
        0.0,
    )                                                     # (B*A, H1)

    # --- Q-net layer 2 -------------------------------------------------------
    h2 = jnp.maximum(
        jnp.dot(h1, w2, preferred_element_type=jnp.float32) + b2, 0.0
    )                                                     # (B*A, H2)

    # --- Q-net layer 3: lane-dense (1, B*A) output ---------------------------
    # w3 (1, H2) contracted against h2's H2 axis -> output row (1, B*A),
    # so the final store is unmasked / lane-dense (no (B*A, 1) vst.msk column).
    q = jax.lax.dot_general(
        w3, h2,
        dimension_numbers=(((1,), (1,)), ((), ())),
        preferred_element_type=jnp.float32,
    )                                                     # (1, B*A)
    out_ref[...] = jnp.tanh(q + b3)


# ----------------------------------------------------------------------------
# Wrapper
# ----------------------------------------------------------------------------
@functools.partial(jax.jit, static_argnames=("dims",))
def full_net_forward(instruction, state, hidden_state, actions, w_pack, v_pack,
                     dims):
    I, S, H, C, E, H1, H2 = dims
    B, A, _ = actions.shape
    (off_ctx, off_q1c, off_q1a, off_q2), _ = _segment_offsets(dims)

    # Wrapper-side layout plumbing (free XLA ops): concat the context inputs,
    # flatten actions, and reshape the kernel's (1, B*A) row back to (B, A, 1).
    x = jnp.concatenate([instruction, state, hidden_state], axis=1)   # (B, ISH)
    acts2d = actions.reshape(B * A, E)                                # (B*A, E)

    kernel = functools.partial(
        _fullnet_kernel, ISH=I + S + H, C=C, E=E, H1=H1, H2=H2, B=B, A=A,
        off_ctx=off_ctx, off_q1c=off_q1c, off_q1a=off_q1a, off_q2=off_q2)

    q_row = pl.pallas_call(
        kernel,
        out_shape=jax.ShapeDtypeStruct((1, B * A), jnp.float32),
        in_specs=[pl.BlockSpec(memory_space=pltpu.MemorySpace.VMEM)] * 4,
        out_specs=pl.BlockSpec(memory_space=pltpu.MemorySpace.VMEM),
    )(x, acts2d, w_pack, v_pack)

    return q_row.reshape(B, A, 1)


# ----------------------------------------------------------------------------
# Parameter packing (done once, outside the hot path): 10 arrays -> 2 operands
# ----------------------------------------------------------------------------
def pack_params(params, dims):
    I, S, H, C, E, H1, H2 = dims
    ISH = I + S + H
    assert max(C, H1, H2) <= 128, "bias/vector slab assumes one 128-lane row each"
    nmax = max(C, H1, H2)
    (off_ctx, off_q1c, off_q1a, off_q2), total_rows = _segment_offsets(dims)

    w_pack = jnp.zeros((total_rows, nmax), jnp.float32)
    w_pack = w_pack.at[off_ctx:off_ctx + ISH, :C].set(params["ctx_w"])
    w_pack = w_pack.at[off_q1c:off_q1c + C, :H1].set(params["q1_w"][:C])
    w_pack = w_pack.at[off_q1a:off_q1a + E, :H1].set(params["q1_w"][C:])
    w_pack = w_pack.at[off_q2:off_q2 + H1, :H2].set(params["q2_w"])

    # (8, 128) vector slab: one vector per sublane row, all starting at lane 0.
    v_pack = jnp.zeros((8, 128), jnp.float32)
    v_pack = v_pack.at[0, :C].set(params["ctx_b"][0])
    v_pack = v_pack.at[1, :H1].set(params["q1_b"][0])
    v_pack = v_pack.at[2, :H2].set(params["q2_b"][0])
    v_pack = v_pack.at[3, :H2].set(params["q3_w"][:, 0])
    v_pack = v_pack.at[4, 0].set(params["q3_b"][0, 0])

    return w_pack, v_pack


# ----------------------------------------------------------------------------
# Pure-JAX reference (mirrors the PyTorch FullNet forward literally)
# ----------------------------------------------------------------------------
def reference_forward(instruction, state, hidden_state, actions, params):
    B, A, _ = actions.shape
    ctx_in = jnp.concatenate([instruction, state, hidden_state], axis=1)
    ctx = jax.nn.relu(ctx_in @ params["ctx_w"] + params["ctx_b"])        # (B, C)
    ctx_rep = jnp.repeat(ctx[:, None, :], A, axis=1)                     # (B, A, C)
    context = jnp.concatenate([ctx_rep, actions], axis=2)                # (B, A, C+E)

    x = jax.nn.relu(context @ params["q1_w"] + params["q1_b"])
    x = jax.nn.relu(x @ params["q2_w"] + params["q2_b"])
    x = jnp.tanh(x @ params["q3_w"] + params["q3_b"])
    return x                                                             # (B, A, 1)


# ----------------------------------------------------------------------------
# Deterministic parameter construction (PyTorch-style uniform init)
# ----------------------------------------------------------------------------
def make_params(key, I, S, H, C, E, H1, H2):
    Qin = C + E
    ks = jax.random.split(key, 8)

    def u(k, shape, fan_in):
        bound = 1.0 / jnp.sqrt(fan_in)
        return jax.random.uniform(k, shape, jnp.float32, -bound, bound)

    return {
        "ctx_w": u(ks[0], (I + S + H, C), I + S + H),
        "ctx_b": u(ks[1], (1, C), I + S + H),
        "q1_w": u(ks[2], (Qin, H1), Qin),
        "q1_b": u(ks[3], (1, H1), Qin),
        "q2_w": u(ks[4], (H1, H2), H1),
        "q2_b": u(ks[5], (1, H2), H1),
        "q3_w": u(ks[6], (H2, 1), H2),
        "q3_b": u(ks[7], (1, 1), H2),
    }


if __name__ == "__main__":
    # Small, forward-consistent shapes.
    B, A = 2, 8            # batch, max actions
    I = 32                 # instruction embedding
    S, H = 16, 16          # state dim, hidden-state dim
    C = 32                 # context_net out_features
    E = 16                 # action_embedding_size  -> qnet_in = C + E = 48
    H1, H2 = 32, 32        # q_network hidden sizes
    dims = (I, S, H, C, E, H1, H2)

    root = jax.random.PRNGKey(0)
    k_inst, k_state, k_hid, k_act, k_param = jax.random.split(root, 5)

    instruction = jax.random.normal(k_inst, (B, I), jnp.float32)
    state = jax.random.normal(k_state, (B, S), jnp.float32)
    hidden_state = jax.random.normal(k_hid, (B, H), jnp.float32)
    actions = jax.random.normal(k_act, (B, A, E), jnp.float32)
    params = make_params(k_param, *dims)

    # Pack weights once (outside the per-step hot path): 2 operand DMAs
    # instead of 10; all in-kernel slices are sublane/lane aligned.
    w_pack, v_pack = pack_params(params, dims)

    out = full_net_forward(instruction, state, hidden_state, actions,
                           w_pack, v_pack, dims=dims)
    out = jax.block_until_ready(out)

    ref = reference_forward(instruction, state, hidden_state, actions, params)
    assert out.shape == (B, A, 1), out.shape
    assert jnp.allclose(out, ref, atol=1e-5, rtol=1e-5), (
        float(jnp.max(jnp.abs(out - ref)))
    )
    print("KERNEL_OK")
</pallas_src>

<mosaic_0001>
module attributes {stable_mosaic.version = 11 : i64} {
  func.func @_fullnet_kernel(%arg0: memref<2x64xf32, #tpu.memory_space<vmem>>, %arg1: memref<16x16xf32, #tpu.memory_space<vmem>>, %arg2: memref<144x32xf32, #tpu.memory_space<vmem>>, %arg3: memref<8x128xf32, #tpu.memory_space<vmem>>, %arg4: memref<1x16xf32, #tpu.memory_space<vmem>>) attributes {dimension_semantics = [], scalar_prefetch = 0 : i64, scratch_operands = 0 : i64, tpu.core_type = #tpu.core_type<tc>} {
    %c0 = arith.constant 0 : index
    %c0_0 = arith.constant 0 : index
    %0 = vector.load %arg0[%c0, %c0_0] : memref<2x64xf32, #tpu.memory_space<vmem>>, vector<2x64xf32>
    %c0_1 = arith.constant 0 : index
    %c0_2 = arith.constant 0 : index
    %1 = vector.load %arg1[%c0_1, %c0_2] : memref<16x16xf32, #tpu.memory_space<vmem>>, vector<16x16xf32>
    %c0_3 = arith.constant 0 : index
    %c0_4 = arith.constant 0 : index
    %2 = vector.load %arg2[%c0_3, %c0_4] : memref<144x32xf32, #tpu.memory_space<vmem>>, vector<64x32xf32>
    %c64 = arith.constant 64 : index
    %c0_5 = arith.constant 0 : index
    %3 = vector.load %arg2[%c64, %c0_5] : memref<144x32xf32, #tpu.memory_space<vmem>>, vector<32x32xf32>
    %c96 = arith.constant 96 : index
    %c0_6 = arith.constant 0 : index
    %4 = vector.load %arg2[%c96, %c0_6] : memref<144x32xf32, #tpu.memory_space<vmem>>, vector<16x32xf32>
    %c112 = arith.constant 112 : index
    %c0_7 = arith.constant 0 : index
    %5 = vector.load %arg2[%c112, %c0_7] : memref<144x32xf32, #tpu.memory_space<vmem>>, vector<32x32xf32>
    %c0_8 = arith.constant 0 : index
    %c0_9 = arith.constant 0 : index
    %6 = vector.load %arg3[%c0_8, %c0_9] : memref<8x128xf32, #tpu.memory_space<vmem>>, vector<1x32xf32>
    %c1 = arith.constant 1 : index
    %c0_10 = arith.constant 0 : index
    %7 = vector.load %arg3[%c1, %c0_10] : memref<8x128xf32, #tpu.memory_space<vmem>>, vector<1x32xf32>
    %c2 = arith.constant 2 : index
    %c0_11 = arith.constant 0 : index
    %8 = vector.load %arg3[%c2, %c0_11] : memref<8x128xf32, #tpu.memory_space<vmem>>, vector<1x32xf32>
    %c3 = arith.constant 3 : index
    %c0_12 = arith.constant 0 : index
    %9 = vector.load %arg3[%c3, %c0_12] : memref<8x128xf32, #tpu.memory_space<vmem>>, vector<1x32xf32>
    %c4 = arith.constant 4 : index
    %c0_13 = arith.constant 0 : index
    %10 = vector.load %arg3[%c4, %c0_13] : memref<8x128xf32, #tpu.memory_space<vmem>>, vector<1x1xf32>
    %cst = arith.constant dense<0.000000e+00> : vector<2x32xf32>
    %11 = tpu.matmul %0, %2, %cst {dimension_numbers = #tpu.dot_dimension_numbers<[1], [0], [0], [1], [0, 0, 1, 1], [], []>} : vector<2x64xf32>, vector<64x32xf32>, vector<2x32xf32> -> vector<2x32xf32>
    %12 = vector.broadcast %6 : vector<1x32xf32> to vector<2x32xf32>
    %13 = arith.addf %11, %12 : vector<2x32xf32>
    %cst_14 = arith.constant 0.000000e+00 : f32
    %14 = vector.broadcast %cst_14 : f32 to vector<2x32xf32>
    %15 = arith.maximumf %13, %14 : vector<2x32xf32>
    %cst_15 = arith.constant dense<0.000000e+00> : vector<2x32xf32>
    %16 = tpu.matmul %15, %3, %cst_15 {dimension_numbers = #tpu.dot_dimension_numbers<[1], [0], [0], [1], [0, 0, 1, 1], [], []>} : vector<2x32xf32>, vector<32x32xf32>, vector<2x32xf32> -> vector<2x32xf32>
    %17 = vector.broadcast %7 : vector<1x32xf32> to vector<2x32xf32>
    %18 = arith.addf %16, %17 : vector<2x32xf32>
    %cst_16 = arith.constant dense<0.000000e+00> : vector<16x32xf32>
    %19 = tpu.matmul %1, %4, %cst_16 {dimension_numbers = #tpu.dot_dimension_numbers<[1], [0], [0], [1], [0, 0, 1, 1], [], []>} : vector<16x16xf32>, vector<16x32xf32>, vector<16x32xf32> -> vector<16x32xf32>
    %20 = vector.shape_cast %19 : vector<16x32xf32> to vector<2x8x32xf32>
    %21 = vector.shape_cast %18 : vector<2x32xf32> to vector<2x1x32xf32>
    %22 = vector.broadcast %21 : vector<2x1x32xf32> to vector<2x8x32xf32>
    %23 = arith.addf %20, %22 : vector<2x8x32xf32>
    %24 = vector.shape_cast %23 : vector<2x8x32xf32> to vector<16x32xf32>
    %cst_17 = arith.constant 0.000000e+00 : f32
    %25 = vector.broadcast %cst_17 : f32 to vector<16x32xf32>
    %26 = arith.maximumf %24, %25 : vector<16x32xf32>
    %cst_18 = arith.constant dense<0.000000e+00> : vector<16x32xf32>
    %27 = tpu.matmul %26, %5, %cst_18 {dimension_numbers = #tpu.dot_dimension_numbers<[1], [0], [0], [1], [0, 0, 1, 1], [], []>} : vector<16x32xf32>, vector<32x32xf32>, vector<16x32xf32> -> vector<16x32xf32>
    %28 = vector.broadcast %8 : vector<1x32xf32> to vector<16x32xf32>
    %29 = arith.addf %27, %28 : vector<16x32xf32>
    %cst_19 = arith.constant 0.000000e+00 : f32
    %30 = vector.broadcast %cst_19 : f32 to vector<16x32xf32>
    %31 = arith.maximumf %29, %30 : vector<16x32xf32>
    %cst_20 = arith.constant dense<0.000000e+00> : vector<1x16xf32>
    %32 = tpu.matmul %9, %31, %cst_20 {dimension_numbers = #tpu.dot_dimension_numbers<[1], [1], [0], [0], [0, 0, 1, 0], [], []>} : vector<1x32xf32>, vector<16x32xf32>, vector<1x16xf32> -> vector<1x16xf32>
    %33 = vector.broadcast %10 : vector<1x1xf32> to vector<1x16xf32>
    %34 = arith.addf %32, %33 : vector<1x16xf32>
    %35 = math.tanh %34 : vector<1x16xf32>
    %c0_21 = arith.constant 0 : index
    %c0_22 = arith.constant 0 : index
    %36 = vector.load %arg4[%c0_21, %c0_22] : memref<1x16xf32, #tpu.memory_space<vmem>>, vector<1x16xf32>
    tpu.vector_store %arg4[%c0_21, %c0_22], %35 {strides = array<i32>} : memref<1x16xf32, #tpu.memory_space<vmem>>, vector<1x16xf32>,
    return
  }
}

</mosaic_0001>

<llo_original>
// kernel: full_net_forward.1
$region0: #{full_net_forward.1}
  #allocation0 [shape = 'u32[]', space=smem, size = 0x4, offset = 0x4, fixed_abs, tag = 'smem constant byte address 0x4 - core index']
  #allocation1 [shape = 'u32[144,128]{1,0:T(1,128)}', space=vmem, size = 0x12000, scoped, tag = 'internal scratch']
  %s0 = inlined_call_operand.vmem [shape: f32[2,64], index: 0, kind: input, shape index: {}]
  %s1 = inlined_call_operand.vmem [shape: f32[16,16], index: 1, kind: input, shape index: {}]
  %s2 = inlined_call_operand.vmem [shape: f32[144,32], index: 2, kind: input, shape index: {}]
  %s3 = inlined_call_operand.vmem [shape: f32[8,128], index: 3, kind: input, shape index: {}]
  %s4 = inlined_call_operand.vmem [shape: f32[1,16], index: 4, kind: output, shape index: {}]
  %s5 = sld [smem:[#allocation0]]
  $region26: #{full_net_forward.1} parent=0
    _
  %s7 = ssub.s32 1, %s5
  %s8 = scalar_select 0, %s7, %s5
  // Predicated region
  $region2: #{full_net_forward.1} parent=0 // pred_check
    _
  $region3: #{full_net_forward.1} parent=0 // pred_check_branch
    %10 = sbr.rel (0) target = $region5
  $region4: #{full_net_forward.1} parent=0 // pred_region
    _
  $region5: #{full_net_forward.1} parent=0 // pred_fallthru
    _
  // Predicated region
  $region6: #{full_net_forward.1} parent=0 // pred_check
    _
  $region7: #{full_net_forward.1} parent=0 // pred_check_branch
    %12 = sbr.rel (0) target = $region9
  $region8: #{full_net_forward.1} parent=0 // pred_region
    _
  $region9: #{full_net_forward.1} parent=0 // pred_fallthru
    _
  // Predicated region
  $region10: #{full_net_forward.1} parent=0 // pred_check
    _
  $region11: #{full_net_forward.1} parent=0 // pred_check_branch
    %14 = sbr.rel (0) target = $region13
  $region12: #{full_net_forward.1} parent=0 // pred_region
    _
  $region13: #{full_net_forward.1} parent=0 // pred_fallthru
    _
  // Predicated region
  $region14: #{full_net_forward.1} parent=0 // pred_check
    _
  $region15: #{full_net_forward.1} parent=0 // pred_check_branch
    %16 = sbr.rel (0) target = $region17
  $region16: #{full_net_forward.1} parent=0 // pred_region
    _
  $region17: #{full_net_forward.1} parent=0 // pred_fallthru
    _
  %v17 = vld [vmem:[%s0] sm:$0x3]
  %v18 = vld [vmem:[%s1] sm:$0xff]
  %v19 = vld [vmem:[%s1 + $0x8] sm:$0xff]
  %v20 = vld [vmem:[%s2] sm:$0xff]
  %v21 = vld [vmem:[%s2 + $0x8] sm:$0xff]
  %v22 = vld [vmem:[%s2 + $0x10] sm:$0xff]
  %v23 = vld [vmem:[%s2 + $0x18] sm:$0xff]
  %v24 = vld [vmem:[%s2 + $0x20] sm:$0xff]
  %v25 = vld [vmem:[%s2 + $0x28] sm:$0xff]
  %v26 = vld [vmem:[%s2 + $0x30] sm:$0xff]
  %v27 = vld [vmem:[%s2 + $0x38] sm:$0xff]
  %v28 = vld [vmem:[%s2 + $0x40] sm:$0xff]
  %v29 = vld [vmem:[%s2 + $0x48] sm:$0xff]
  %v30 = vld [vmem:[%s2 + $0x50] sm:$0xff]
  %v31 = vld [vmem:[%s2 + $0x58] sm:$0xff]
  %v32 = vld [vmem:[%s2 + $0x60] sm:$0xff]
  %v33 = vld [vmem:[%s2 + $0x68] sm:$0xff]
  %v34 = vld [vmem:[%s2 + $0x70] sm:$0xff]
  %v35 = vld [vmem:[%s2 + $0x78] sm:$0xff]
  %v36 = vld [vmem:[%s2 + $0x80] sm:$0xff]
  %v37 = vld [vmem:[%s2 + $0x88] sm:$0xff]
  %v38 = vld [vmem:[%s3] sm:$0x1]
  %v39 = vld [vmem:[%s3 + $0x1] sm:$0x1]
  %v40 = vld [vmem:[%s3 + $0x2] sm:$0x1]
  %v41 = vld [vmem:[%s3 + $0x3] sm:$0x1]
  %v42 = vld [vmem:[%s3 + $0x4] sm:$0x1]
  %v43 = vlaneseq
  %v44 = vshrl.u32 %v43, 7
  %v45 = vsub.s32 0, %v44
  %v46 = vrot.slane %v38, %v45
  %vm47 = vcmask 523264
  %v49 = vsel %vm47, %v17, 0
  %51 = vmatprep.subr.mxu0 0.0
  %52 = vmatpush1.msra.mxu0 %v20
  %53 = vmatprep.subr.mxu0 0.0
  %54 = vmatpush1.msra.mxu0 %v21
  %55 = vmatprep.subr.mxu0 0.0
  %56 = vmatpush1.msra.mxu0 %v22
  %57 = vmatprep.subr.mxu0 0.0
  %58 = vmatpush1.msra.mxu0 %v23
  %59 = vmatprep.subr.mxu0 0.0
  %60 = vmatpush1.msra.mxu0 %v24
  %61 = vmatprep.subr.mxu0 0.0
  %62 = vmatpush1.msra.mxu0 %v25
  %63 = vmatprep.subr.mxu0 0.0
  %64 = vmatpush1.msra.mxu0 %v26
  %65 = vmatprep.subr.mxu0 0.0
  %66 = vmatpush1.msra.mxu0 %v27
  %67 = vmatprep.subr.mxu0 0.0
  %68 = vmatpush1.msra.mxu0 0.0
  %69 = vmatprep.subr.mxu0 0.0
  %70 = vmatpush1.msra.mxu0 0.0
  %71 = vmatprep.subr.mxu0 0.0
  %72 = vmatpush1.msra.mxu0 0.0
  %73 = vmatprep.subr.mxu0 0.0
  %74 = vmatpush1.msra.mxu0 0.0
  %75 = vmatprep.subr.mxu0 0.0
  %76 = vmatpush1.msra.mxu0 0.0
  %77 = vmatprep.subr.mxu0 0.0
  %78 = vmatpush1.msra.mxu0 0.0
  %79 = vmatprep.subr.mxu0 0.0
  %80 = vmatpush1.msra.mxu0 0.0
  %81 = vmatprep.subr.mxu0 0.0
  %82 = vmatpush1.msra.mxu0 0.0
  %83 = vmatprep.subr.mxu0 0.0
  %84 = vmatpush1.msra.mxu0 0.0
  %85 = vmatprep.subr.mxu0 0.0
  %86 = vmatpush1.msra.mxu0 0.0
  %87 = vmatprep.subr.mxu0 0.0
  %88 = vmatpush1.msra.mxu0 0.0
  %89 = vmatprep.subr.mxu0 0.0
  %90 = vmatpush1.msra.mxu0 0.0
  %91 = vmatprep.subr.mxu0 0.0
  %92 = vmatpush1.msra.mxu0 0.0
  %93 = vmatprep.subr.mxu0 0.0
  %94 = vmatpush1.msra.mxu0 0.0
  %95 = vmatprep.subr.mxu0 0.0
  %96 = vmatpush1.msra.mxu0 0.0
  %97 = vmatprep.subr.mxu0 0.0
  %98 = vmatpush1.msra.mxu0 0.0
  %99 = vmatprep.subr.mxu0 0.0
  %100 = vmatpush1.msra.mxu0 0.0
  %101 = vmatprep.subr.mxu0 0.0
  %102 = vmatpush1.msra.mxu0 0.0
  %103 = vmatprep.subr.mxu0 0.0
  %104 = vmatpush1.msra.mxu0 0.0
  %105 = vmatprep.subr.mxu0 0.0
  %106 = vmatpush1.msra.mxu0 0.0
  %107 = vmatprep.subr.mxu0 0.0
  %108 = vmatpush1.msra.mxu0 0.0
  %109 = vmatprep.subr.mxu0 0.0
  %110 = vmatpush1.msra.mxu0 0.0
  %111 = vmatprep.subr.mxu0 0.0
  %112 = vmatpush1.msra.mxu0 0.0
  %113 = vmatprep.subr.mxu0 0.0
  %114 = vmatpush1.msra.mxu0 0.0
  %115 = vmatprep.mubr.f32.mxu0 0.0
  %116 = vmatmul.mubr.f32.gmra.mrb[0].mxu0 %v49
  %v117 = vpop.f32.mrb[0].mxu0
  %v118 = vadd.f32 %v46, %v117
  %v119 = vpop.f32.mrb[0].mxu0
  %120 = vdwg.mxu0
  %v121 = vmax.f32 %v118, 0.0
  %v122 = vlaneseq
  %v123 = vshrl.u32 %v122, 7
  %v124 = vsub.s32 0, %v123
  %v125 = vrot.slane %v39, %v124
  %vm126 = vcmask 261120
  %v128 = vsel %vm126, %v121, 0
  %130 = vmatprep.subr.mxu0 0.0
  %131 = vmatpush1.msra.mxu0 %v28
  %132 = vmatprep.subr.mxu0 0.0
  %133 = vmatpush1.msra.mxu0 %v29
  %134 = vmatprep.subr.mxu0 0.0
  %135 = vmatpush1.msra.mxu0 %v30
  %136 = vmatprep.subr.mxu0 0.0
  %137 = vmatpush1.msra.mxu0 %v31
  %138 = vmatprep.subr.mxu0 0.0
  %139 = vmatpush1.msra.mxu0 0.0
  %140 = vmatprep.subr.mxu0 0.0
  %141 = vmatpush1.msra.mxu0 0.0
  %142 = vmatprep.subr.mxu0 0.0
  %143 = vmatpush1.msra.mxu0 0.0
  %144 = vmatprep.subr.mxu0 0.0
  %145 = vmatpush1.msra.mxu0 0.0
  %146 = vmatprep.subr.mxu0 0.0
  %147 = vmatpush1.msra.mxu0 0.0
  %148 = vmatprep.subr.mxu0 0.0
  %149 = vmatpush1.msra.mxu0 0.0
  %150 = vmatprep.subr.mxu0 0.0
  %151 = vmatpush1.msra.mxu0 0.0
  %152 = vmatprep.subr.mxu0 0.0
  %153 = vmatpush1.msra.mxu0 0.0
  %154 = vmatprep.subr.mxu0 0.0
  %155 = vmatpush1.msra.mxu0 0.0
  %156 = vmatprep.subr.mxu0 0.0
  %157 = vmatpush1.msra.mxu0 0.0
  %158 = vmatprep.subr.mxu0 0.0
  %159 = vmatpush1.msra.mxu0 0.0
  %160 = vmatprep.subr.mxu0 0.0
  %161 = vmatpush1.msra.mxu0 0.0
  %162 = vmatprep.subr.mxu0 0.0
  %163 = vmatpush1.msra.mxu0 0.0
  %164 = vmatprep.subr.mxu0 0.0
  %165 = vmatpush1.msra.mxu0 0.0
  %166 = vmatprep.subr.mxu0 0.0
  %167 = vmatpush1.msra.mxu0 0.0
  %168 = vmatprep.subr.mxu0 0.0
  %169 = vmatpush1.msra.mxu0 0.0
  %170 = vmatprep.subr.mxu0 0.0
  %171 = vmatpush1.msra.mxu0 0.0
  %172 = vmatprep.subr.mxu0 0.0
  %173 = vmatpush1.msra.mxu0 0.0
  %174 = vmatprep.subr.mxu0 0.0
  %175 = vmatpush1.msra.mxu0 0.0
  %176 = vmatprep.subr.mxu0 0.0
  %177 = vmatpush1.msra.mxu0 0.0
  %178 = vmatprep.subr.mxu0 0.0
  %179 = vmatpush1.msra.mxu0 0.0
  %180 = vmatprep.subr.mxu0 0.0
  %181 = vmatpush1.msra.mxu0 0.0
  %182 = vmatprep.subr.mxu0 0.0
  %183 = vmatpush1.msra.mxu0 0.0
  %184 = vmatprep.subr.mxu0 0.0
  %185 = vmatpush1.msra.mxu0 0.0
  %186 = vmatprep.subr.mxu0 0.0
  %187 = vmatpush1.msra.mxu0 0.0
  %188 = vmatprep.subr.mxu0 0.0
  %189 = vmatpush1.msra.mxu0 0.0
  %190 = vmatprep.subr.mxu0 0.0
  %191 = vmatpush1.msra.mxu0 0.0
  %192 = vmatprep.subr.mxu0 0.0
  %193 = vmatpush1.msra.mxu0 0.0
  %194 = vmatprep.mubr.f32.mxu0 0.0
  %195 = vmatmul.mubr.f32.gmra.mrb[0].mxu0 %v128
  %v196 = vpop.f32.mrb[0].mxu0
  %v197 = vadd.f32 %v125, %v196
  %v198 = vpop.f32.mrb[0].mxu0
  %199 = vdwg.mxu0
  %vm200 = vcmask 130048
  %v202 = vsel %vm200, %v18, 0
  %v205 = vsel %vm200, %v19, 0
  %207 = vmatprep.subr.mxu0 0.0
  %208 = vmatpush1.msra.mxu0 %v32
  %209 = vmatprep.subr.mxu0 0.0
  %210 = vmatpush1.msra.mxu0 %v33
  %211 = vmatprep.subr.mxu0 0.0
  %212 = vmatpush1.msra.mxu0 0.0
  %213 = vmatprep.subr.mxu0 0.0
  %214 = vmatpush1.msra.mxu0 0.0
  %215 = vmatprep.subr.mxu0 0.0
  %216 = vmatpush1.msra.mxu0 0.0
  %217 = vmatprep.subr.mxu0 0.0
  %218 = vmatpush1.msra.mxu0 0.0
  %219 = vmatprep.subr.mxu0 0.0
  %220 = vmatpush1.msra.mxu0 0.0
  %221 = vmatprep.subr.mxu0 0.0
  %222 = vmatpush1.msra.mxu0 0.0
  %223 = vmatprep.subr.mxu0 0.0
  %224 = vmatpush1.msra.mxu0 0.0
  %225 = vmatprep.subr.mxu0 0.0
  %226 = vmatpush1.msra.mxu0 0.0
  %227 = vmatprep.subr.mxu0 0.0
  %228 = vmatpush1.msra.mxu0 0.0
  %229 = vmatprep.subr.mxu0 0.0
  %230 = vmatpush1.msra.mxu0 0.0
  %231 = vmatprep.subr.mxu0 0.0
  %232 = vmatpush1.msra.mxu0 0.0
  %233 = vmatprep.subr.mxu0 0.0
  %234 = vmatpush1.msra.mxu0 0.0
  %235 = vmatprep.subr.mxu0 0.0
  %236 = vmatpush1.msra.mxu0 0.0
  %237 = vmatprep.subr.mxu0 0.0
  %238 = vmatpush1.msra.mxu0 0.0
  %239 = vmatprep.subr.mxu0 0.0
  %240 = vmatpush1.msra.mxu0 0.0
  %241 = vmatprep.subr.mxu0 0.0
  %242 = vmatpush1.msra.mxu0 0.0
  %243 = vmatprep.subr.mxu0 0.0
  %244 = vmatpush1.msra.mxu0 0.0
  %245 = vmatprep.subr.mxu0 0.0
  %246 = vmatpush1.msra.mxu0 0.0
  %247 = vmatprep.subr.mxu0 0.0
  %248 = vmatpush1.msra.mxu0 0.0
  %249 = vmatprep.subr.mxu0 0.0
  %250 = vmatpush1.msra.mxu0 0.0
  %251 = vmatprep.subr.mxu0 0.0
  %252 = vmatpush1.msra.mxu0 0.0
  %253 = vmatprep.subr.mxu0 0.0
  %254 = vmatpush1.msra.mxu0 0.0
  %255 = vmatprep.subr.mxu0 0.0
  %256 = vmatpush1.msra.mxu0 0.0
  %257 = vmatprep.subr.mxu0 0.0
  %258 = vmatpush1.msra.mxu0 0.0
  %259 = vmatprep.subr.mxu0 0.0
  %260 = vmatpush1.msra.mxu0 0.0
  %261 = vmatprep.subr.mxu0 0.0
  %262 = vmatpush1.msra.mxu0 0.0
  %263 = vmatprep.subr.mxu0 0.0
  %264 = vmatpush1.msra.mxu0 0.0
  %265 = vmatprep.subr.mxu0 0.0
  %266 = vmatpush1.msra.mxu0 0.0
  %267 = vmatprep.subr.mxu0 0.0
  %268 = vmatpush1.msra.mxu0 0.0
  %269 = vmatprep.subr.mxu0 0.0
  %270 = vmatpush1.msra.mxu0 0.0
  %271 = vmatprep.mubr.f32.mxu0 0.0
  %272 = vmatmul.mubr.f32.gmra.mrb[0].mxu0 %v202
  %v273 = vpop.f32.mrb[0].mxu0
  %v274 = vadd.f32 0.0, %v273
  %v275 = vpop.f32.mrb[0].mxu0
  %276 = vmatprep.mubr.f32.mxu0 0.0
  %277 = vmatmul.mubr.f32.gmra.mrb[0].mxu0 %v205
  %v278 = vpop.f32.mrb[0].mxu0
  %v279 = vadd.f32 0.0, %v278
  %v280 = vpop.f32.mrb[0].mxu0
  %281 = vdwg.mxu0
  %v284 = vunpack.c.l.s4 1966171168
  %v285 = vunpack.c.0.s8 %v284
  %v286 = vlaneseq
  %v287 = vshrl.u32 %v286, 7
  %v288 = vsub.s32 %v285, %v287
  %v289 = vrot.slane %v197, %v288
  %v290 = vcombine.high %v289, %v289
  %v292 = vunpack.c.l.s4 1966171168
  %v293 = vunpack.c.0.s8 %v292
  %v294 = vlaneseq
  %v295 = vshrl.u32 %v294, 7
  %v296 = vsub.s32 %v293, %v295
  %v297 = vrot.slane %v289, %v296
  %v299 = vunpack.c.l.s4 1966171168
  %v300 = vunpack.c.0.s8 %v299
  %v301 = vlaneseq
  %v302 = vshrl.u32 %v301, 7
  %v303 = vsub.s32 %v300, %v302
  %v304 = vrot.slane %v290, %v303
  %v305 = vlaneseq
  %v306 = vshrl.u32 %v305, 7
  %v307 = vsub.s32 0, %v306
  %v308 = vrot.slane %v297, %v307
  %v309 = vlaneseq
  %v310 = vshrl.u32 %v309, 7
  %v311 = vsub.s32 0, %v310
  %v312 = vrot.slane %v304, %v311
  %v315 = vadd.f32 %v274, %v308
  %v316 = vadd.f32 %v279, %v312
  %v317 = vmax.f32 %v315, 0.0
  %v318 = vmax.f32 %v316, 0.0
  %v319 = vlaneseq
  %v320 = vshrl.u32 %v319, 7
  %v321 = vsub.s32 0, %v320
  %v322 = vrot.slane %v40, %v321
  %v324 = vsel %vm126, %v317, 0
  %v327 = vsel %vm126, %v318, 0
  %329 = vmatprep.subr.mxu0 0.0
  %330 = vmatpush1.msra.mxu0 %v34
  %331 = vmatprep.subr.mxu0 0.0
  %332 = vmatpush1.msra.mxu0 %v35
  %333 = vmatprep.subr.mxu0 0.0
  %334 = vmatpush1.msra.mxu0 %v36
  %335 = vmatprep.subr.mxu0 0.0
  %336 = vmatpush1.msra.mxu0 %v37
  %337 = vmatprep.subr.mxu0 0.0
  %338 = vmatpush1.msra.mxu0 0.0
  %339 = vmatprep.subr.mxu0 0.0
  %340 = vmatpush1.msra.mxu0 0.0
  %341 = vmatprep.subr.mxu0 0.0
  %342 = vmatpush1.msra.mxu0 0.0
  %343 = vmatprep.subr.mxu0 0.0
  %344 = vmatpush1.msra.mxu0 0.0
  %345 = vmatprep.subr.mxu0 0.0
  %346 = vmatpush1.msra.mxu0 0.0
  %347 = vmatprep.subr.mxu0 0.0
  %348 = vmatpush1.msra.mxu0 0.0
  %349 = vmatprep.subr.mxu0 0.0
  %350 = vmatpush1.msra.mxu0 0.0
  %351 = vmatprep.subr.mxu0 0.0
  %352 = vmatpush1.msra.mxu0 0.0
  %353 = vmatprep.subr.mxu0 0.0
  %354 = vmatpush1.msra.mxu0 0.0
  %355 = vmatprep.subr.mxu0 0.0
  %356 = vmatpush1.msra.mxu0 0.0
  %357 = vmatprep.subr.mxu0 0.0
  %358 = vmatpush1.msra.mxu0 0.0
  %359 = vmatprep.subr.mxu0 0.0
  %360 = vmatpush1.msra.mxu0 0.0
  %361 = vmatprep.subr.mxu0 0.0
  %362 = vmatpush1.msra.mxu0 0.0
  %363 = vmatprep.subr.mxu0 0.0
  %364 = vmatpush1.msra.mxu0 0.0
  %365 = vmatprep.subr.mxu0 0.0
  %366 = vmatpush1.msra.mxu0 0.0
  %367 = vmatprep.subr.mxu0 0.0
  %368 = vmatpush1.msra.mxu0 0.0
  %369 = vmatprep.subr.mxu0 0.0
  %370 = vmatpush1.msra.mxu0 0.0
  %371 = vmatprep.subr.mxu0 0.0
  %372 = vmatpush1.msra.mxu0 0.0
  %373 = vmatprep.subr.mxu0 0.0
  %374 = vmatpush1.msra.mxu0 0.0
  %375 = vmatprep.subr.mxu0 0.0
  %376 = vmatpush1.msra.mxu0 0.0
  %377 = vmatprep.subr.mxu0 0.0
  %378 = vmatpush1.msra.mxu0 0.0
  %379 = vmatprep.subr.mxu0 0.0
  %380 = vmatpush1.msra.mxu0 0.0
  %381 = vmatprep.subr.mxu0 0.0
  %382 = vmatpush1.msra.mxu0 0.0
  %383 = vmatprep.subr.mxu0 0.0
  %384 = vmatpush1.msra.mxu0 0.0
  %385 = vmatprep.subr.mxu0 0.0
  %386 = vmatpush1.msra.mxu0 0.0
  %387 = vmatprep.subr.mxu0 0.0
  %388 = vmatpush1.msra.mxu0 0.0
  %389 = vmatprep.subr.mxu0 0.0
  %390 = vmatpush1.msra.mxu0 0.0
  %391 = vmatprep.subr.mxu0 0.0
  %392 = vmatpush1.msra.mxu0 0.0
  %393 = vmatprep.mubr.f32.mxu0 0.0
  %394 = vmatmul.mubr.f32.gmra.mrb[0].mxu0 %v324
  %v395 = vpop.f32.mrb[0].mxu0
  %v396 = vadd.f32 %v322, %v395
  %v397 = vpop.f32.mrb[0].mxu0
  %398 = vmatprep.mubr.f32.mxu0 0.0
  %399 = vmatmul.mubr.f32.gmra.mrb[0].mxu0 %v327
  %v400 = vpop.f32.mrb[0].mxu0
  %v401 = vadd.f32 %v322, %v400
  %v402 = vpop.f32.mrb[0].mxu0
  %403 = vdwg.mxu0
  %v404 = vmax.f32 %v396, 0.0
  %v405 = vmax.f32 %v401, 0.0
  %407 = vset.pattern.permute.xlu0 0
  %408 = vperm.xlu0 %407, %v42
  %v409 = vpop.permute.xlu0 %408
  %v412 = vsel %vm126, %v41, 0
  %v415 = vsel %vm126, %v404, 0
  %v418 = vsel %vm126, %v405, 0
  %420 = vmatprep.subr.mxu0 0.0
  %421 = vmatpush1.xpose.msra.mxu0 %v415
  %422 = vmatprep.subr.mxu0 0.0
  %423 = vmatpush1.xpose.msra.mxu0 %v418
  %424 = vmatprep.subr.mxu0 0.0
  %425 = vmatpush1.xpose.msra.mxu0 0.0
  %426 = vmatprep.subr.mxu0 0.0
  %427 = vmatpush1.xpose.msra.mxu0 0.0
  %428 = vmatprep.subr.mxu0 0.0
  %429 = vmatpush1.xpose.msra.mxu0 0.0
  %430 = vmatprep.subr.mxu0 0.0
  %431 = vmatpush1.xpose.msra.mxu0 0.0
  %432 = vmatprep.subr.mxu0 0.0
  %433 = vmatpush1.xpose.msra.mxu0 0.0
  %434 = vmatprep.subr.mxu0 0.0
  %435 = vmatpush1.xpose.msra.mxu0 0.0
  %436 = vmatprep.subr.mxu0 0.0
  %437 = vmatpush1.xpose.msra.mxu0 0.0
  %438 = vmatprep.subr.mxu0 0.0
  %439 = vmatpush1.xpose.msra.mxu0 0.0
  %440 = vmatprep.subr.mxu0 0.0
  %441 = vmatpush1.xpose.msra.mxu0 0.0
  %442 = vmatprep.subr.mxu0 0.0
  %443 = vmatpush1.xpose.msra.mxu0 0.0
  %444 = vmatprep.subr.mxu0 0.0
  %445 = vmatpush1.xpose.msra.mxu0 0.0
  %446 = vmatprep.subr.mxu0 0.0
  %447 = vmatpush1.xpose.msra.mxu0 0.0
  %448 = vmatprep.subr.mxu0 0.0
  %449 = vmatpush1.xpose.msra.mxu0 0.0
  %450 = vmatprep.subr.mxu0 0.0
  %451 = vmatpush1.xpose.msra.mxu0 0.0
  %452 = vmatprep.subr.mxu0 0.0
  %453 = vmatpush1.xpose.msra.mxu0 0.0
  %454 = vmatprep.subr.mxu0 0.0
  %455 = vmatpush1.xpose.msra.mxu0 0.0
  %456 = vmatprep.subr.mxu0 0.0
  %457 = vmatpush1.xpose.msra.mxu0 0.0
  %458 = vmatprep.subr.mxu0 0.0
  %459 = vmatpush1.xpose.msra.mxu0 0.0
  %460 = vmatprep.subr.mxu0 0.0
  %461 = vmatpush1.xpose.msra.mxu0 0.0
  %462 = vmatprep.subr.mxu0 0.0
  %463 = vmatpush1.xpose.msra.mxu0 0.0
  %464 = vmatprep.subr.mxu0 0.0
  %465 = vmatpush1.xpose.msra.mxu0 0.0
  %466 = vmatprep.subr.mxu0 0.0
  %467 = vmatpush1.xpose.msra.mxu0 0.0
  %468 = vmatprep.subr.mxu0 0.0
  %469 = vmatpush1.xpose.msra.mxu0 0.0
  %470 = vmatprep.subr.mxu0 0.0
  %471 = vmatpush1.xpose.msra.mxu0 0.0
  %472 = vmatprep.subr.mxu0 0.0
  %473 = vmatpush1.xpose.msra.mxu0 0.0
  %474 = vmatprep.subr.mxu0 0.0
  %475 = vmatpush1.xpose.msra.mxu0 0.0
  %476 = vmatprep.subr.mxu0 0.0
  %477 = vmatpush1.xpose.msra.mxu0 0.0
  %478 = vmatprep.subr.mxu0 0.0
  %479 = vmatpush1.xpose.msra.mxu0 0.0
  %480 = vmatprep.subr.mxu0 0.0
  %481 = vmatpush1.xpose.msra.mxu0 0.0
  %482 = vmatprep.subr.mxu0 0.0
  %483 = vmatpush1.xpose.msra.mxu0 0.0
  %484 = vmatprep.mubr.f32.mxu0 0.0
  %485 = vmatmul.mubr.f32.gmra.mrb[0].mxu0 %v412
  %v486 = vpop.f32.mrb[0].mxu0
  %v487 = vadd.f32 %v409, %v486
  %v488 = vpop.f32.mrb[0].mxu0
  %489 = vdwg.mxu0
  %v490 = vtanh.pop %v487
  %vm491 = vcmask 122880
  %492 = vst.msk [vmem:[%s4] sm:$0x1] %vm491, %v490
  // Predicated region
  $region18: #{full_net_forward.1} parent=0 // pred_check
    _
  $region19: #{full_net_forward.1} parent=0 // pred_check_branch
    %494 = sbr.rel (0) target = $region21
  $region20: #{full_net_forward.1} parent=0 // pred_region
    _
  $region21: #{full_net_forward.1} parent=0 // pred_fallthru
    _
  // Predicated region
  $region22: #{full_net_forward.1} parent=0 // pred_check
    _
  $region23: #{full_net_forward.1} parent=0 // pred_check_branch
    %496 = sbr.rel (0) target = $region25
  $region24: #{full_net_forward.1} parent=0 // pred_region
    _
  $region25: #{full_net_forward.1} parent=0 // pred_fallthru
    _

</llo_original>
